<compile_context>
chip_gen: v6e
topology: v6e:2x2x1
jax: 0.10.0
libtpu: 0.0.40
codegen_flags: <defaults>
</compile_context>

<pallas_src>
import jax
import jax.numpy as jnp
from jax.experimental import pallas as pl
from jax.experimental.pallas import tpu as pltpu

K = 3  # taps of unfold((3,1), padding=(1,0)) along the half-height axis


def _make_conv_kernel(block_b, cin, hh, w, shift):
    """Fused roll / pad / im2col / matmul kernel body (all shapes static)."""
    w2 = 2 * w
    spatial = hh * w2  # == full image H*W, flattened NCHW spatial index

    # Output width-roll folded onto the input: within every w-wide block of the
    # flat spatial axis, roll by `shift`. A full-axis roll is right everywhere
    # except the |shift|==1 wrap column, which uses a second roll amount.
    main_shift = shift % spatial
    fix_shift = (shift - w if shift > 0 else shift + w) % spatial
    fix_col = 0 if shift > 0 else w - 1

    def kernel(x_ref, wm_ref, o_ref, rhs_ref):
        # x_ref  : (block_b, cin, spatial)   NCHW input, spatial flattened
        # wm_ref : (cout, K * cin)           weights, contraction order (k, cin)
        # o_ref  : (block_b, cout, spatial)  NCHW output, spatial flattened
        # rhs_ref: (K * cin, spatial)        persistent im2col scratch slab
        wm = wm_ref[...]

        # Lane-position masks built once at (1, spatial); broadcast in where.
        col = jax.lax.broadcasted_iota(jnp.int32, (1, spatial), 1)
        is_fix_col = (col % w) == fix_col        # width wrap column of out-roll
        first_row = col < w2                     # half-height row n == 0
        last_row = col >= (spatial - w2)         # half-height row n == hh - 1

        def body(b, carry):
            xb = x_ref[b]                        # (cin, spatial)
            for k in range(K):                   # K == 3, static
                # One circular roll per tap: combines the module's input roll
                # (+shift on the half-height axis), the tap offset (k-1) and
                # the module's output width roll (pre-applied; valid because
                # d*w2 is a multiple of w, so col % w is preserved).
                d = (1 - k + shift) % hh
                s_main = (main_shift + d * w2) % spatial
                s_fix = (fix_shift + d * w2) % spatial
                t = jnp.where(is_fix_col,
                              pltpu.roll(xb, s_fix, axis=1),
                              pltpu.roll(xb, s_main, axis=1))
                # unfold zero padding -> boundary masks (only taps 0 and K-1).
                if k == 0:                       # padded row n-1+k == -1
                    t = jnp.where(first_row, 0.0, t)
                elif k == K - 1:                 # padded row n-1+k == hh
                    t = jnp.where(last_row, 0.0, t)
                rhs_ref[k * cin:(k + 1) * cin, :] = t.astype(rhs_ref.dtype)
            o_ref[b] = jnp.dot(wm, rhs_ref[...],
                               preferred_element_type=jnp.float32
                               ).astype(o_ref.dtype)
            return carry

        jax.lax.fori_loop(0, block_b, body, 0)

    return kernel


def make_forward(batch, cin, cout, h_img, w_img, *, shift=1, block_b=4,
                 compute_dtype=jnp.float32,
                 vmem_limit_bytes=40 * 1024 * 1024):
    """Jitted forward: x (batch,cin,h_img,w_img) NCHW, w (cout,cin,3)."""
    assert shift in (1, -1), "module only ever uses a +/-1 shift"
    assert h_img % 2 == 0
    assert batch % block_b == 0
    hh, w = h_img // 2, w_img
    spatial = h_img * w_img                      # == hh * (2*w)
    kc = K * cin

    kernel = _make_conv_kernel(block_b, cin, hh, w, shift)

    itemsize = jnp.dtype(compute_dtype).itemsize
    cost = pl.CostEstimate(
        flops=2 * batch * cout * kc * spatial,
        transcendentals=0,
        bytes_accessed=4 * batch * spatial * (cin + cout) + cout * kc * itemsize,
    )

    conv = pl.pallas_call(
        kernel,
        out_shape=jax.ShapeDtypeStruct((batch, cout, spatial), jnp.float32),
        grid_spec=pltpu.PrefetchScalarGridSpec(
            num_scalar_prefetch=0,
            grid=(batch // block_b,),
            in_specs=[
                pl.BlockSpec((block_b, cin, spatial), lambda i: (i, 0, 0)),
                pl.BlockSpec((cout, kc), lambda i: (0, 0)),
            ],
            out_specs=pl.BlockSpec((block_b, cout, spatial),
                                   lambda i: (i, 0, 0)),
            scratch_shapes=[pltpu.VMEM((kc, spatial), compute_dtype)],
        ),
        compiler_params=pltpu.CompilerParams(
            # "parallel" lets megacore/v7x shard the batch grid across cores.
            dimension_semantics=("parallel",),
            vmem_limit_bytes=vmem_limit_bytes,
        ),
        cost_estimate=cost,
    )

    @jax.jit
    def forward(x, wgt):
        # Metadata-only reshape: NCHW flat spatial index == n*(2*w) + o*w + m.
        x_flat = x.reshape(batch, cin, spatial)
        # (cout, cin, K) -> (cout, K*cin) matching the kernel's (k, cin) order.
        w_mat = jnp.transpose(wgt, (0, 2, 1)).reshape(cout, kc)
        w_mat = w_mat.astype(compute_dtype)
        # TODO(synk): for compute_dtype=bf16, also cast x_flat here to halve the
        # input HBM read; kept f32 by default to preserve 1e-4 accuracy.
        y = conv(x_flat, w_mat)
        return y.reshape(batch, cout, h_img, w_img)     # metadata-only
    return forward


def make_kernel_generated_2(shift=1, block_b=4, compute_dtype=jnp.float32):
    """Production config of the PyTorch module: x (128,48,56,56), w (192,48,3).

    Tuning notes: block_b=4 / 40 MiB VMEM is safe on v7x (64 MiB); on
    v5e/v6e (128 MiB VMEM) block_b=8 with vmem_limit_bytes~=80 MiB amortizes
    pipeline overhead slightly better; compute_dtype=bf16 restores MXU
    headroom on v5e/v7x at ~1e-2 relative accuracy.
    """
    return make_forward(128, 48, 192, 56, 56, shift=shift, block_b=block_b,
                        compute_dtype=compute_dtype)


def reference_forward(x, wgt, shift):
    """Pure-JAX transcription of the PyTorch forward (for verification)."""
    b, cin, h_img, w_img = x.shape
    cout = wgt.shape[0]
    hh, w2 = h_img // 2, 2 * w_img
    t = x.reshape(b, cin, hh, 2, w_img)
    t = jnp.roll(t, shift, axis=2)
    t = t.reshape(b, cin, hh, w2)
    tp = jnp.pad(t, ((0, 0), (0, 0), (1, 1), (0, 0)))
    patches = jnp.stack([tp[:, :, k:k + hh, :] for k in range(K)], axis=2)
    patches = patches.reshape(b, cin, K, hh, 2, w_img)
    out = jnp.einsum('ljknom,ijk->linom', patches, wgt)
    out = out.reshape(b, cout, h_img, w_img)
    return jnp.roll(out, shift, axis=3)


if __name__ == "__main__":
    # Small shapes structurally consistent with the module
    # (production: batch=128, cin=48, cout=192, 56x56 -> make_kernel_generated_2()).
    B, CIN, COUT, HI, WI = 4, 16, 32, 16, 16
    SHIFT = 1  # TODO(synk): PyTorch draws +/-1 at random per module instance; fixed here.

    key = jax.random.PRNGKey(0)
    kx, kw = jax.random.split(key)
    x = jax.random.normal(kx, (B, CIN, HI, WI), dtype=jnp.float32)
    wgt = jax.random.normal(kw, (COUT, CIN, K), dtype=jnp.float32)

    fwd = make_forward(B, CIN, COUT, HI, WI, shift=SHIFT, block_b=2)
    y = jax.block_until_ready(fwd(x, wgt))
    assert y.shape == (B, COUT, HI, WI), y.shape

    y_ref = reference_forward(x, wgt, SHIFT)
    err = float(jnp.max(jnp.abs(y - y_ref)))
    rel = err / (float(jnp.max(jnp.abs(y_ref))) + 1e-6)
    assert rel < 1e-4, f"mismatch: max abs err {err}, rel {rel}"

    print("KERNEL_OK")
</pallas_src>

<mosaic_0001>
module attributes {stable_mosaic.version = 11 : i64} {
  func.func @kernel(%arg0: i32, %arg1: memref<2x16x256xf32, #tpu.memory_space<vmem>>, %arg2: memref<32x48xf32, #tpu.memory_space<vmem>>, %arg3: memref<2x32x256xf32, #tpu.memory_space<vmem>>, %arg4: memref<48x256xf32, #tpu.memory_space<vmem>>) attributes {dimension_semantics = [#tpu.dimension_semantics<parallel>], iteration_bounds = array<i64: 2>, scalar_prefetch = 0 : i64, scratch_operands = 1 : i64, tpu.core_type = #tpu.core_type<tc>, window_params = [{transform_indices = @transform_0, window_bounds = array<i64: 2, 16, 256>}, {pipeline_mode = #tpu.pipeline_mode<synchronous>, transform_indices = @transform_1, window_bounds = array<i64: 32, 48>}, {transform_indices = @transform_2, window_bounds = array<i64: 2, 32, 256>}]} {
    %c0 = arith.constant 0 : index
    %c0_0 = arith.constant 0 : index
    %0 = vector.load %arg2[%c0, %c0_0] : memref<32x48xf32, #tpu.memory_space<vmem>>, vector<32x48xf32>
    %1 = tpu.iota {dimensions = array<i32: 1>} : vector<1x256xi32>
    %c16_i32 = arith.constant 16 : i32
    %c0_i32 = arith.constant 0 : i32
    %2 = arith.cmpi eq, %c16_i32, %c0_i32 : i32
    %c1_i32 = arith.constant 1 : i32
    %3 = arith.select %2, %c1_i32, %c16_i32 : i32
    %4 = vector.broadcast %3 : i32 to vector<1x256xi32>
    %5 = arith.remsi %1, %4 : vector<1x256xi32>
    %c0_i32_1 = arith.constant 0 : i32
    %6 = vector.broadcast %c0_i32_1 : i32 to vector<1x256xi32>
    %7 = arith.cmpi ne, %5, %6 : vector<1x256xi32>
    %c0_i32_2 = arith.constant 0 : i32
    %8 = vector.broadcast %c0_i32_2 : i32 to vector<1x256xi32>
    %9 = arith.cmpi slt, %5, %8 : vector<1x256xi32>
    %c0_i32_3 = arith.constant 0 : i32
    %10 = arith.cmpi slt, %3, %c0_i32_3 : i32
    %11 = vector.broadcast %10 : i1 to vector<1x256xi1>
    %12 = vector.broadcast %11 : vector<1x256xi1> to vector<1x256xi1>
    %13 = arith.xori %9, %12 : vector<1x256xi1>
    %14 = arith.andi %13, %7 : vector<1x256xi1>
    %15 = vector.broadcast %3 : i32 to vector<1x256xi32>
    %16 = arith.addi %5, %15 : vector<1x256xi32>
    %17 = arith.select %14, %16, %5 : vector<1x256xi1>, vector<1x256xi32>
    %c0_i32_4 = arith.constant 0 : i32
    %18 = vector.broadcast %c0_i32_4 : i32 to vector<1x256xi32>
    %19 = arith.cmpi eq, %17, %18 : vector<1x256xi32>
    %c32_i32 = arith.constant 32 : i32
    %20 = vector.broadcast %c32_i32 : i32 to vector<1x256xi32>
    %21 = arith.cmpi slt, %1, %20 : vector<1x256xi32>
    %c224_i32 = arith.constant 224 : i32
    %22 = vector.broadcast %c224_i32 : i32 to vector<1x256xi32>
    %23 = arith.cmpi sge, %1, %22 : vector<1x256xi32>
    %c0_i32_5 = arith.constant 0 : i32
    %c2_i32 = arith.constant 2 : i32
    %24 = arith.addi %c0_i32_5, %c2_i32 : i32
    %c1_i32_6 = arith.constant 1 : i32
    scf.for %arg5 = %c0_i32_5 to %24 step %c1_i32_6  : i32 {
      %25 = arith.index_cast %arg5 : i32 to index
      %c0_8 = arith.constant 0 : index
      %c0_9 = arith.constant 0 : index
      %26 = vector.load %arg1[%25, %c0_8, %c0_9] : memref<2x16x256xf32, #tpu.memory_space<vmem>>, vector<1x16x256xf32>
      %27 = vector.shape_cast %26 : vector<1x16x256xf32> to vector<16x256xf32>
      %c49_i32 = arith.constant 49 : i32
      %28 = tpu.dynamic_rotate %27 by %c49_i32 dim 1 : vector<16x256xf32>, i32 -> vector<16x256xf32>
      %c65_i32 = arith.constant 65 : i32
      %29 = tpu.dynamic_rotate %27 by %c65_i32 dim 1 : vector<16x256xf32>, i32 -> vector<16x256xf32>
      %30 = vector.shape_cast %19 : vector<1x256xi1> to vector<1x256xi1>
      %31 = vector.broadcast %30 : vector<1x256xi1> to vector<16x256xi1>
      %32 = arith.select %31, %28, %29 : vector<16x256xi1>, vector<16x256xf32>
      %cst = arith.constant 0.000000e+00 : f32
      %33 = vector.shape_cast %21 : vector<1x256xi1> to vector<1x256xi1>
      %34 = vector.broadcast %33 : vector<1x256xi1> to vector<16x256xi1>
      %35 = vector.broadcast %cst : f32 to vector<16x256xf32>
      %36 = arith.select %34, %35, %32 : vector<16x256xi1>, vector<16x256xf32>
      %c0_10 = arith.constant 0 : index
      %c0_11 = arith.constant 0 : index
      %37 = vector.load %arg4[%c0_10, %c0_11] : memref<48x256xf32, #tpu.memory_space<vmem>>, vector<16x256xf32>
      tpu.vector_store %arg4[%c0_10, %c0_11], %36 {strides = array<i32>} : memref<48x256xf32, #tpu.memory_space<vmem>>, vector<16x256xf32>,
      %c17_i32 = arith.constant 17 : i32
      %38 = tpu.dynamic_rotate %27 by %c17_i32 dim 1 : vector<16x256xf32>, i32 -> vector<16x256xf32>
      %c33_i32 = arith.constant 33 : i32
      %39 = tpu.dynamic_rotate %27 by %c33_i32 dim 1 : vector<16x256xf32>, i32 -> vector<16x256xf32>
      %40 = vector.shape_cast %19 : vector<1x256xi1> to vector<1x256xi1>
      %41 = vector.broadcast %40 : vector<1x256xi1> to vector<16x256xi1>
      %42 = arith.select %41, %38, %39 : vector<16x256xi1>, vector<16x256xf32>
      %c16 = arith.constant 16 : index
      %c0_12 = arith.constant 0 : index
      %43 = vector.load %arg4[%c16, %c0_12] : memref<48x256xf32, #tpu.memory_space<vmem>>, vector<16x256xf32>
      tpu.vector_store %arg4[%c16, %c0_12], %42 {strides = array<i32>} : memref<48x256xf32, #tpu.memory_space<vmem>>, vector<16x256xf32>,
      %c241_i32 = arith.constant 241 : i32
      %44 = tpu.dynamic_rotate %27 by %c241_i32 dim 1 : vector<16x256xf32>, i32 -> vector<16x256xf32>
      %c1_i32_13 = arith.constant 1 : i32
      %45 = tpu.dynamic_rotate %27 by %c1_i32_13 dim 1 : vector<16x256xf32>, i32 -> vector<16x256xf32>
      %46 = vector.shape_cast %19 : vector<1x256xi1> to vector<1x256xi1>
      %47 = vector.broadcast %46 : vector<1x256xi1> to vector<16x256xi1>
      %48 = arith.select %47, %44, %45 : vector<16x256xi1>, vector<16x256xf32>
      %cst_14 = arith.constant 0.000000e+00 : f32
      %49 = vector.shape_cast %23 : vector<1x256xi1> to vector<1x256xi1>
      %50 = vector.broadcast %49 : vector<1x256xi1> to vector<16x256xi1>
      %51 = vector.broadcast %cst_14 : f32 to vector<16x256xf32>
      %52 = arith.select %50, %51, %48 : vector<16x256xi1>, vector<16x256xf32>
      %c32 = arith.constant 32 : index
      %c0_15 = arith.constant 0 : index
      %53 = vector.load %arg4[%c32, %c0_15] : memref<48x256xf32, #tpu.memory_space<vmem>>, vector<16x256xf32>
      tpu.vector_store %arg4[%c32, %c0_15], %52 {strides = array<i32>} : memref<48x256xf32, #tpu.memory_space<vmem>>, vector<16x256xf32>,
      %c0_16 = arith.constant 0 : index
      %c0_17 = arith.constant 0 : index
      %54 = vector.load %arg4[%c0_16, %c0_17] : memref<48x256xf32, #tpu.memory_space<vmem>>, vector<48x256xf32>
      %cst_18 = arith.constant dense<0.000000e+00> : vector<32x256xf32>
      %55 = tpu.matmul %0, %54, %cst_18 {dimension_numbers = #tpu.dot_dimension_numbers<[1], [0], [0], [1], [0, 0, 1, 1], [], []>} : vector<32x48xf32>, vector<48x256xf32>, vector<32x256xf32> -> vector<32x256xf32>
      %56 = arith.index_cast %arg5 : i32 to index
      %c0_19 = arith.constant 0 : index
      %c0_20 = arith.constant 0 : index
      %57 = vector.load %arg3[%56, %c0_19, %c0_20] : memref<2x32x256xf32, #tpu.memory_space<vmem>>, vector<1x32x256xf32>
      %58 = vector.shape_cast %57 : vector<1x32x256xf32> to vector<32x256xf32>
      %59 = vector.shape_cast %55 : vector<32x256xf32> to vector<1x32x256xf32>
      tpu.vector_store %arg3[%56, %c0_19, %c0_20], %59 {strides = array<i32>} : memref<2x32x256xf32, #tpu.memory_space<vmem>>, vector<1x32x256xf32>,
    }
    %c2_i32_7 = arith.constant 2 : i32
    return
  }
  func.func @transform_0(%arg0: i32) -> (i32, i32, i32) {
    %c0_i32 = arith.constant 0 : i32
    %c0_i32_0 = arith.constant 0 : i32
    %c0_i32_1 = arith.constant 0 : i32
    return %arg0, %c0_i32, %c0_i32_0 : i32, i32, i32
  }
  func.func @transform_1(%arg0: i32) -> (i32, i32) {
    %c0_i32 = arith.constant 0 : i32
    %c0_i32_0 = arith.constant 0 : i32
    %c0_i32_1 = arith.constant 0 : i32
    return %c0_i32, %c0_i32_0 : i32, i32
  }
  func.func @transform_2(%arg0: i32) -> (i32, i32, i32) {
    %c0_i32 = arith.constant 0 : i32
    %c0_i32_0 = arith.constant 0 : i32
    %c0_i32_1 = arith.constant 0 : i32
    return %arg0, %c0_i32, %c0_i32_0 : i32, i32, i32
  }
}

</mosaic_0001>

<llo_original>
// kernel: forward.1
$region0: #{forward.1}
  #allocation0 [shape = 'u32[]', space=smem, size = 0x4, offset = 0x4, fixed_abs, tag = 'smem constant byte address 0x4 - core index']
  #allocation1 [shape = 'u32[144,128]{1,0:T(1,128)}', space=vmem, size = 0x12000, scoped, tag = 'internal scratch']
  #allocation2 [shape = 'f32[48,256]{1,0:T(8,128)}', space=vmem, size = 0xc000, scoped, tag = 'scratch operand']
  %s0 = inlined_call_operand.vmem [shape: f32[4,16,256], index: 0, kind: input, shape index: {}]
  %s1 = inlined_call_operand.vmem [shape: f32[32,48], index: 1, kind: input, shape index: {}]
  %s2 = inlined_call_operand.vmem [shape: f32[4,32,256], index: 2, kind: output, shape index: {}]
  %s3 = sld [smem:[#allocation0]]
  $region48: #{forward.1} parent=0
    _
  %s5 = ssub.s32 1, %s3
  %s6 = scalar_select 0, %s5, %s3
  loop: start=0, step=1, limit=4
  $region2: #{forward.1} parent=0 // loop_pre_header
    _
  $region3: #{forward.1} parent=0 // loop_header
    %s8 = sphi 0, %s12
    %p9 = scmp.ge.s32.totalorder %s8, 4
    %s18 = sphi 0, %s20
    %s21 = sphi 0, %s18
    %s22 = sphi 0, %s21
    %s38 = sphi 0, %s22
    %s42 = sphi 0, %s42
    %s44 = sphi 0, %s42
    %s45 = sphi 0, %s44
    %s59 = sphi 0, %s45
    %s65 = sphi 0, %s67
    %s68 = sphi 0, %s65
    %s69 = sphi 0, %s68
    %s85 = sphi 0, %s69
  $region4: #{forward.1} parent=0 // loop_header_branch
    %11 = sbr.rel (%p9) target = $region8
  $region5: #{forward.1} parent=0 // loop_body
    %s13 = ssub.s32 %s8, 1
    %s14 = ssub.s32 %s8, 2
    %s15 = sadd.s32 %s8, 1
    %s16 = ssub.s32 %s8, %s15
    %p17 = scmp.eq.s32.totalorder %s16, 0
    %s19 = sadd.s32 %s18, 1
    %s20 = scalar_select %p17, %s18, %s19
    %p23 = pneg %p17
    %p24 = scmp.eq.s32.totalorder %s8, 1
    %p25 = por %p23, %p24
    %p26 = scmp.ne.s32.totalorder %s18, %s21
    %p27 = scmp.eq.s32.totalorder %s8, 0
    %p28 = por %p26, %p27
    %p29 = scmp.ne.s32.totalorder %s18, %s21
    %p30 = scmp.eq.s32.totalorder %s13, 1
    %p31 = por %p29, %p30
    %p32 = scmp.ne.s32.totalorder %s21, %s22
    %p33 = scmp.eq.s32.totalorder %s13, 0
    %p34 = por %p32, %p33
    %p35 = scmp.ne.s32.totalorder %s21, %s22
    %p36 = scmp.eq.s32.totalorder %s14, 1
    %p37 = por %p35, %p36
    %p39 = scmp.ne.s32.totalorder %s22, %s38
    %p40 = scmp.eq.s32.totalorder %s14, 0
    %p41 = por %p39, %p40
    %s43 = sadd.s32 %s42, 1
    %p46 = scmp.eq.s32.totalorder %s8, 1
    %p47 = scmp.ne.s32.totalorder %s42, %s44
    %p48 = scmp.eq.s32.totalorder %s8, 0
    %p49 = por %p47, %p48
    %p50 = scmp.ne.s32.totalorder %s42, %s44
    %p51 = scmp.eq.s32.totalorder %s13, 1
    %p52 = por %p50, %p51
    %p53 = scmp.ne.s32.totalorder %s44, %s45
    %p54 = scmp.eq.s32.totalorder %s13, 0
    %p55 = por %p53, %p54
    %p56 = scmp.ne.s32.totalorder %s44, %s45
    %p57 = scmp.eq.s32.totalorder %s14, 1
    %p58 = por %p56, %p57
    %p60 = scmp.ne.s32.totalorder %s45, %s59
    %p61 = scmp.eq.s32.totalorder %s14, 0
    %p62 = por %p60, %p61
    %s63 = ssub.s32 %s8, %s15
    %p64 = scmp.eq.s32.totalorder %s63, 0
    %s66 = sadd.s32 %s65, 1
    %s67 = scalar_select %p64, %s65, %s66
    %p70 = pneg %p64
    %p71 = scmp.eq.s32.totalorder %s8, 1
    %p72 = por %p70, %p71
    %p73 = scmp.ne.s32.totalorder %s65, %s68
    %p74 = scmp.eq.s32.totalorder %s8, 0
    %p75 = por %p73, %p74
    %p76 = scmp.ne.s32.totalorder %s65, %s68
    %p77 = scmp.eq.s32.totalorder %s13, 1
    %p78 = por %p76, %p77
    %p79 = scmp.ne.s32.totalorder %s68, %s69
    %p80 = scmp.eq.s32.totalorder %s13, 0
    %p81 = por %p79, %p80
    %p82 = scmp.ne.s32.totalorder %s68, %s69
    %p83 = scmp.eq.s32.totalorder %s14, 1
    %p84 = por %p82, %p83
    %p86 = scmp.ne.s32.totalorder %s69, %s85
    %p87 = scmp.eq.s32.totalorder %s14, 0
    %p88 = por %p86, %p87
    %p89 = scmp.le.s32.totalorder 1, %s8
    %p90 = scmp.lt.s32.totalorder %s8, 3
    %p91 = pnand %p89, %p90
    %p92 = pneg %p91
    // Predicated region
    $region9: #{forward.1} parent=5 // pred_check
      _
    $region10: #{forward.1} parent=5 // pred_check_branch
      %94 = sbr.rel (%p91) target = $region12
    $region11: #{forward.1} parent=5 // pred_region
      %s95 = ssub.s32 %s8, 1
      // Predicated region
      $region13: #{forward.1} parent=11 // pred_check
        %p96 = pneg %p55
      $region14: #{forward.1} parent=11 // pred_check_branch
        %98 = sbr.rel (%p96) target = $region16
      $region15: #{forward.1} parent=11 // pred_region
        _
      $region16: #{forward.1} parent=11 // pred_fallthru
        _
    $region12: #{forward.1} parent=5 // pred_fallthru
      _
    %p99 = scmp.lt.s32.totalorder %s8, 2
    // Predicated region
    $region17: #{forward.1} parent=5 // pred_check
      %p100 = pneg %p99
    $region18: #{forward.1} parent=5 // pred_check_branch
      %102 = sbr.rel (%p100) target = $region20
    $region19: #{forward.1} parent=5 // pred_region
      // Predicated region
      $region21: #{forward.1} parent=19 // pred_check
        %p103 = pneg %p28
      $region22: #{forward.1} parent=19 // pred_check_branch
        %105 = sbr.rel (%p103) target = $region24
      $region23: #{forward.1} parent=19 // pred_region
        %s106 = smul.u32 2, %s8
        %p107 = scmp.lt.s32.totalorder %s106, 3
        %s108 = scalar_select %p107, %s106, 3
        %s109 = smul.addr %s108, 4
        %s110 = smul.addr %s109, 8
        %s111 = scalar_lea.vmem %s0, %s110
        %s112 = smul.u32 2, %s8
      $region24: #{forward.1} parent=19 // pred_fallthru
        _
    $region20: #{forward.1} parent=5 // pred_fallthru
      _
    %p113 = scmp.le.s32.totalorder 1, %s8
    %p114 = scmp.lt.s32.totalorder %s8, 3
    %p115 = pnand %p113, %p114
    %p116 = pneg %p115
    // Predicated region
    $region25: #{forward.1} parent=5 // pred_check
      _
    $region26: #{forward.1} parent=5 // pred_check_branch
      %118 = sbr.rel (%p115) target = $region28
    $region27: #{forward.1} parent=5 // pred_region
      %s119 = ssub.s32 %s8, 1
      %s120 = smul.u32 2, %s13
      %p121 = scmp.lt.s32.totalorder %s120, 3
      %s122 = scalar_select %p121, %s120, 3
      %s123 = smul.addr %s122, 4
      %s124 = smul.addr %s123, 8
      %s125 = scalar_lea.vmem %s0, %s124
      %p126 = pneg %p34
      %p127 = pneg %p31
      %p128 = pneg %p55
      %p129 = pneg %p52
      %p130 = pneg %p81
      %p131 = pneg %p78
      %s132 = smul.u32 2, %s13
      %p133 = scmp.lt.s32.totalorder %s132, 3
      %s134 = scalar_select %p133, %s132, 3
      %s135 = smul.addr %s134, 8
      %s136 = smul.addr %s135, 8
      %s137 = scalar_lea.vmem %s2, %s136
      %s138 = smul.u32 2, %s13
      %p139 = scmp.lt.s32.totalorder %s138, 3
      %s140 = scalar_select %p139, %s138, 3
      %s141 = smul.addr %s140, 4
      %s142 = smul.addr %s141, 8
      %s143 = scalar_lea.vmem %s0, %s142
      %s144 = smul.u32 2, %s13
      %s145 = smul.u32 2, %s13
      %p146 = scmp.lt.s32.totalorder %s145, 3
      %s147 = scalar_select %p146, %s145, 3
      %s148 = smul.addr %s147, 8
      %s149 = smul.addr %s148, 8
      %s150 = scalar_lea.vmem %s2, %s149
      %s151 = smul.u32 2, %s13
      %v152 = vld [vmem:[%s1] sm:$0xff]
      %v153 = vld [vmem:[%s1 + $0x8] sm:$0xff]
      %v154 = vld [vmem:[%s1 + $0x10] sm:$0xff]
      %v155 = vld [vmem:[%s1 + $0x18] sm:$0xff]
      %v156 = vlaneseq
      %v157 = vand.u32 %v156, 127
      %v158 = vadd.s32 %v157, 128
      %vm159 = vcmp.lt.s32.totalorder %v157, 0
      %v160 = vsub.s32 0, %v157
      %v161 = vsel %vm159, %v160, %v157
      %v162 = vshrl.u32 %v161, 4
      %v163 = vand.u32 %v161, 15
      %v164 = vsub.s32 0, %v163
      %v165 = vsel %vm159, %v164, %v163
      %vm166 = vcmp.lt.s32.totalorder %v158, 0
      %v167 = vsub.s32 0, %v158
      %v168 = vsel %vm166, %v167, %v158
      %v169 = vshrl.u32 %v168, 4
      %v170 = vand.u32 %v168, 15
      %v171 = vsub.s32 0, %v170
      %v172 = vsel %vm166, %v171, %v170
      %vm173 = vcmp.ne.s32.totalorder %v165, 0
      %vm174 = vcmp.ne.s32.totalorder %v172, 0
      %vm175 = vcmp.lt.s32.totalorder %v165, 0
      %vm176 = vcmp.lt.s32.totalorder %v172, 0
      %vm177 = vmand %vm175, %vm173
      %vm178 = vmand %vm176, %vm174
      %v179 = vadd.s32 %v165, 16
      %v180 = vadd.s32 %v172, 16
      %v181 = vsel %vm177, %v179, %v165
      %v182 = vsel %vm178, %v180, %v172
      %vm183 = vcmp.eq.s32.totalorder %v181, 0
      %vm184 = vcmp.eq.s32.totalorder %v182, 0
      %vm185 = vcmp.lt.s32.totalorder %v157, 32
      %vm186 = vcmp.lt.s32.totalorder %v158, 32
      %vm187 = vcmp.ge.s32.totalorder %v157, 224
      %vm188 = vcmp.ge.s32.totalorder %v158, 224
      loop: start=0, step=1, limit=2
      $region29: #{forward.1} parent=27 // loop_pre_header
        _
      $region30: #{forward.1} parent=27 // loop_header
        %s190 = sphi 0, %s194
        %p191 = scmp.ge.s32.totalorder %s190, 2
      $region31: #{forward.1} parent=27 // loop_header_branch
        %193 = sbr.rel (%p191) target = $region35
      $region32: #{forward.1} parent=27 // loop_body
        %s195 = smul.u32 %s190, 4
        %s196 = smul.addr %s195, 8
        %s197 = scalar_lea.vmem %s143, %s196
        %v198 = vld [vmem:[%s197] sm:$0xff]
        %v199 = vld [vmem:[%s197 + $0x8] sm:$0xff]
        %v200 = vld [vmem:[%s197 + $0x10] sm:$0xff]
        %v201 = vld [vmem:[%s197 + $0x18] sm:$0xff]
        %202 = vrot.lane.b32.xlu0 %v198, 49
        %v203 = vpop.permute.xlu0 %202
        %204 = vrot.lane.b32.xlu0 %v200, 49
        %v205 = vpop.permute.xlu0 %204
        %206 = vrot.lane.b32.xlu0 %v199, 49
        %v207 = vpop.permute.xlu0 %206
        %208 = vrot.lane.b32.xlu0 %v201, 49
        %v209 = vpop.permute.xlu0 %208
        %vm210 = vcmp.lt.s32.totalorder %v157, 49
        %v211 = vsel %vm210, %v203, %v207
        %v212 = vsel %vm210, %v205, %v209
        %v213 = vsel %vm210, %v207, %v203
        %v214 = vsel %vm210, %v209, %v205
        %215 = vrot.lane.b32.xlu0 %v198, 65
        %v216 = vpop.permute.xlu0 %215
        %217 = vrot.lane.b32.xlu0 %v200, 65
        %v218 = vpop.permute.xlu0 %217
        %219 = vrot.lane.b32.xlu0 %v199, 65
        %v220 = vpop.permute.xlu0 %219
        %221 = vrot.lane.b32.xlu0 %v201, 65
        %v222 = vpop.permute.xlu0 %221
        %vm223 = vcmp.lt.s32.totalorder %v157, 65
        %v224 = vsel %vm223, %v216, %v220
        %v225 = vsel %vm223, %v218, %v222
        %v226 = vsel %vm223, %v220, %v216
        %v227 = vsel %vm223, %v222, %v218
        %v228 = vsel %vm183, 1, 0
        %v229 = vsel %vm184, 1, 0
        %vm230 = vcmp.eq.s32.totalorder %v228, 1
        %vm231 = vcmp.eq.s32.totalorder %v229, 1
        %v232 = vsel %vm230, %v213, %v226
        %v233 = vsel %vm231, %v211, %v224
        %v234 = vsel %vm230, %v214, %v227
        %v235 = vsel %vm231, %v212, %v225
        %v236 = vsel %vm185, 1, 0
        %v237 = vsel %vm186, 1, 0
        %vm238 = vcmp.eq.s32.totalorder %v236, 1
        %vm239 = vcmp.eq.s32.totalorder %v237, 1
        %v240 = vsel %vm238, 0.0, %v232
        %v241 = vsel %vm239, 0.0, %v233
        %v242 = vsel %vm238, 0.0, %v234
        %v243 = vsel %vm239, 0.0, %v235
        %244 = vst [vmem:[#allocation2] sm:$0xff] %v240
        %245 = vst [vmem:[#allocation2 + $0x8] sm:$0xff] %v241
        %246 = vst [vmem:[#allocation2 + $0x10] sm:$0xff] %v242
        %247 = vst [vmem:[#allocation2 + $0x18] sm:$0xff] %v243
        %248 = vrot.lane.b32.xlu0 %v198, 17
        %v249 = vpop.permute.xlu0 %248
        %250 = vrot.lane.b32.xlu0 %v200, 17
        %v251 = vpop.permute.xlu0 %250
        %252 = vrot.lane.b32.xlu0 %v199, 17
        %v253 = vpop.permute.xlu0 %252
        %254 = vrot.lane.b32.xlu0 %v201, 17
        %v255 = vpop.permute.xlu0 %254
        %vm256 = vcmp.lt.s32.totalorder %v157, 17
        %v257 = vsel %vm256, %v249, %v253
        %v258 = vsel %vm256, %v251, %v255
        %v259 = vsel %vm256, %v253, %v249
        %v260 = vsel %vm256, %v255, %v251
        %261 = vrot.lane.b32.xlu0 %v198, 33
        %v262 = vpop.permute.xlu0 %261
        %263 = vrot.lane.b32.xlu0 %v200, 33
        %v264 = vpop.permute.xlu0 %263
        %265 = vrot.lane.b32.xlu0 %v199, 33
        %v266 = vpop.permute.xlu0 %265
        %267 = vrot.lane.b32.xlu0 %v201, 33
        %v268 = vpop.permute.xlu0 %267
        %vm269 = vcmp.lt.s32.totalorder %v157, 33
        %v270 = vsel %vm269, %v262, %v266
        %v271 = vsel %vm269, %v264, %v268
        %v272 = vsel %vm269, %v266, %v262
        %v273 = vsel %vm269, %v268, %v264
        %v274 = vsel %vm230, %v259, %v272
        %v275 = vsel %vm231, %v257, %v270
        %v276 = vsel %vm230, %v260, %v273
        %v277 = vsel %vm231, %v258, %v271
        %278 = vst [vmem:[#allocation2 + $0x20] sm:$0xff] %v274
        %279 = vst [vmem:[#allocation2 + $0x28] sm:$0xff] %v275
        %280 = vst [vmem:[#allocation2 + $0x30] sm:$0xff] %v276
        %281 = vst [vmem:[#allocation2 + $0x38] sm:$0xff] %v277
        %282 = vrot.lane.b32.xlu0 %v198, 113
        %v283 = vpop.permute.xlu0 %282
        %284 = vrot.lane.b32.xlu0 %v200, 113
        %v285 = vpop.permute.xlu0 %284
        %286 = vrot.lane.b32.xlu0 %v199, 113
        %v287 = vpop.permute.xlu0 %286
        %288 = vrot.lane.b32.xlu0 %v201, 113
        %v289 = vpop.permute.xlu0 %288
        %vm290 = vcmp.lt.s32.totalorder %v157, 113
        %v291 = vsel %vm290, %v283, %v287
        %v292 = vsel %vm290, %v285, %v289
        %v293 = vsel %vm290, %v287, %v283
        %v294 = vsel %vm290, %v289, %v285
        %295 = vrot.lane.b32.xlu0 %v198, 1
        %v296 = vpop.permute.xlu0 %295
        %297 = vrot.lane.b32.xlu0 %v200, 1
        %v298 = vpop.permute.xlu0 %297
        %299 = vrot.lane.b32.xlu0 %v199, 1
        %v300 = vpop.permute.xlu0 %299
        %301 = vrot.lane.b32.xlu0 %v201, 1
        %v302 = vpop.permute.xlu0 %301
        %vm303 = vcmp.lt.s32.totalorder %v157, 1
        %v304 = vsel %vm303, %v296, %v300
        %v305 = vsel %vm303, %v298, %v302
        %v306 = vsel %vm303, %v300, %v296
        %v307 = vsel %vm303, %v302, %v298
        %v308 = vsel %vm230, %v291, %v306
        %v309 = vsel %vm231, %v293, %v304
        %v310 = vsel %vm230, %v292, %v307
        %v311 = vsel %vm231, %v294, %v305
        %v312 = vsel %vm187, 1, 0
        %v313 = vsel %vm188, 1, 0
        %vm314 = vcmp.eq.s32.totalorder %v312, 1
        %vm315 = vcmp.eq.s32.totalorder %v313, 1
        %v316 = vsel %vm314, 0.0, %v308
        %v317 = vsel %vm315, 0.0, %v309
        %v318 = vsel %vm314, 0.0, %v310
        %v319 = vsel %vm315, 0.0, %v311
        %320 = vst [vmem:[#allocation2 + $0x40] sm:$0xff] %v316
        %321 = vst [vmem:[#allocation2 + $0x48] sm:$0xff] %v317
        %322 = vst [vmem:[#allocation2 + $0x50] sm:$0xff] %v318
        %323 = vst [vmem:[#allocation2 + $0x58] sm:$0xff] %v319
        %v324 = vld [vmem:[#allocation2] sm:$0xff]
        %v325 = vld [vmem:[#allocation2 + $0x8] sm:$0xff]
        %v326 = vld [vmem:[#allocation2 + $0x10] sm:$0xff]
        %v327 = vld [vmem:[#allocation2 + $0x18] sm:$0xff]
        %v328 = vld [vmem:[#allocation2 + $0x20] sm:$0xff]
        %v329 = vld [vmem:[#allocation2 + $0x28] sm:$0xff]
        %v330 = vld [vmem:[#allocation2 + $0x30] sm:$0xff]
        %v331 = vld [vmem:[#allocation2 + $0x38] sm:$0xff]
        %v332 = vld [vmem:[#allocation2 + $0x40] sm:$0xff]
        %v333 = vld [vmem:[#allocation2 + $0x48] sm:$0xff]
        %v334 = vld [vmem:[#allocation2 + $0x50] sm:$0xff]
        %v335 = vld [vmem:[#allocation2 + $0x58] sm:$0xff]
        %vm336 = vcmask 392192
        %v338 = vsel %vm336, %v152, 0
        %v341 = vsel %vm336, %v153, 0
        %v344 = vsel %vm336, %v154, 0
        %v347 = vsel %vm336, %v155, 0
        %349 = vmatprep.subr.mxu0 0.0
        %350 = vmatpush1.msra.mxu0 0.0
        %351 = vmatprep.subr.mxu0 0.0
        %352 = vmatpush1.msra.mxu0 0.0
        %353 = vmatprep.subr.mxu0 0.0
        %354 = vmatpush1.msra.mxu0 0.0
        %355 = vmatprep.subr.mxu0 0.0
        %356 = vmatpush1.msra.mxu0 0.0
        %357 = vmatprep.subr.mxu0 0.0
        %358 = vmatpush1.msra.mxu0 0.0
        %359 = vmatprep.subr.mxu0 0.0
        %360 = vmatpush1.msra.mxu0 0.0
        %361 = vmatprep.subr.mxu0 0.0
        %362 = vmatpush1.msra.mxu0 0.0
        %363 = vmatprep.subr.mxu0 0.0
        %364 = vmatpush1.msra.mxu0 0.0
        %365 = vmatprep.subr.mxu0 0.0
        %366 = vmatpush1.msra.mxu0 0.0
        %367 = vmatprep.subr.mxu0 0.0
        %368 = vmatpush1.msra.mxu0 0.0
        %369 = vmatprep.subr.mxu0 %v335
        %370 = vmatpush1.msra.mxu0 %v334
        %371 = vmatprep.subr.mxu0 %v333
        %372 = vmatpush1.msra.mxu0 %v332
        %373 = vmatprep.subr.mxu0 %v331
        %374 = vmatpush1.msra.mxu0 %v330
        %375 = vmatprep.subr.mxu0 %v329
        %376 = vmatpush1.msra.mxu0 %v328
        %377 = vmatprep.subr.mxu0 %v327
        %378 = vmatpush1.msra.mxu0 %v326
        %379 = vmatprep.subr.mxu0 %v325
        %380 = vmatpush1.msra.mxu0 %v324
        %381 = vmatprep.subr.mxu0 0.0
        %382 = vmatpush2.msra.mxu0 0.0
        %383 = vmatprep.subr.mxu0 0.0
        %384 = vmatpush2.msra.mxu0 0.0
        %385 = vmatprep.subr.mxu0 0.0
        %386 = vmatpush2.msra.mxu0 0.0
        %387 = vmatprep.subr.mxu0 0.0
        %388 = vmatpush2.msra.mxu0 0.0
        %389 = vmatprep.subr.mxu0 0.0
        %390 = vmatpush2.msra.mxu0 0.0
        %391 = vmatprep.subr.mxu0 0.0
        %392 = vmatpush2.msra.mxu0 0.0
        %393 = vmatprep.subr.mxu0 0.0
        %394 = vmatpush2.msra.mxu0 0.0
        %395 = vmatprep.subr.mxu0 0.0
        %396 = vmatpush2.msra.mxu0 0.0
        %397 = vmatprep.subr.mxu0 0.0
        %398 = vmatpush2.msra.mxu0 0.0
        %399 = vmatprep.subr.mxu0 0.0
        %400 = vmatpush2.msra.mxu0 0.0
        %401 = vmatprep.subr.mxu0 0.0
        %402 = vmatpush2.msra.mxu0 0.0
        %403 = vmatprep.subr.mxu0 0.0
        %404 = vmatpush2.msra.mxu0 0.0
        %405 = vmatprep.subr.mxu0 0.0
        %406 = vmatpush2.msra.mxu0 0.0
        %407 = vmatprep.subr.mxu0 0.0
        %408 = vmatpush2.msra.mxu0 0.0
        %409 = vmatprep.subr.mxu0 0.0
        %410 = vmatpush2.msra.mxu0 0.0
        %411 = vmatprep.subr.mxu0 0.0
        %412 = vmatpush2.msra.mxu0 0.0
        %413 = vmatprep.mubr.f32.mxu0 0.0
        %414 = vmatmul.mubr.f32.gmra.mxu0 %v338
        %v415 = vpop.f32.mrf.mxu0
        %v416 = vadd.f32 0.0, %v415
        %v417 = vpop.f32.mrf.mxu0
        %v418 = vadd.f32 0.0, %v417
        %419 = vmatprep.mubr.f32.mxu0 0.0
        %420 = vmatmul.mubr.f32.gmra.mxu0 %v341
        %v421 = vpop.f32.mrf.mxu0
        %v422 = vadd.f32 0.0, %v421
        %v423 = vpop.f32.mrf.mxu0
        %v424 = vadd.f32 0.0, %v423
        %425 = vmatprep.mubr.f32.mxu0 0.0
        %426 = vmatmul.mubr.f32.gmra.mxu0 %v344
        %v427 = vpop.f32.mrf.mxu0
        %v428 = vadd.f32 0.0, %v427
        %v429 = vpop.f32.mrf.mxu0
        %v430 = vadd.f32 0.0, %v429
        %431 = vmatprep.mubr.f32.mxu0 0.0
        %432 = vmatmul.mubr.f32.gmra.mxu0 %v347
        %v433 = vpop.f32.mrf.mxu0
        %v434 = vadd.f32 0.0, %v433
        %v435 = vpop.f32.mrf.mxu0
        %v436 = vadd.f32 0.0, %v435
        %437 = vdwg.mxu0
        %s438 = smul.u32 %s190, 8
        %s439 = smul.addr %s438, 8
        %s440 = scalar_lea.vmem %s150, %s439
        %441 = vst [vmem:[%s440] sm:$0xff] %v416
        %442 = vst [vmem:[%s440 + $0x8] sm:$0xff] %v418
        %443 = vst [vmem:[%s440 + $0x10] sm:$0xff] %v422
        %444 = vst [vmem:[%s440 + $0x18] sm:$0xff] %v424
        %445 = vst [vmem:[%s440 + $0x20] sm:$0xff] %v428
        %446 = vst [vmem:[%s440 + $0x28] sm:$0xff] %v430
        %447 = vst [vmem:[%s440 + $0x30] sm:$0xff] %v434
        %448 = vst [vmem:[%s440 + $0x38] sm:$0xff] %v436
      $region33: #{forward.1} parent=27 // loop_footer
        %s194 = sadd.s32 1, %s190
      $region34: #{forward.1} parent=27 // loop_footer_branch
        %189 = sbr.rel target = $region30
      $region35: #{forward.1} parent=27 // loop_exit
        _
      %s449 = smul.u32 2, %s13
      %p450 = scmp.lt.s32.totalorder %s449, 3
      %s451 = scalar_select %p450, %s449, 3
      %s452 = smul.addr %s451, 8
      %s453 = smul.addr %s452, 8
      %s454 = scalar_lea.vmem %s2, %s453
      // Predicated region
      $region36: #{forward.1} parent=27 // pred_check
        %p455 = pneg %p78
      $region37: #{forward.1} parent=27 // pred_check_branch
        %457 = sbr.rel (%p455) target = $region39
      $region38: #{forward.1} parent=27 // pred_region
        %s458 = smul.u32 2, %s13
      $region39: #{forward.1} parent=27 // pred_fallthru
        _
    $region28: #{forward.1} parent=5 // pred_fallthru
      _
    %p459 = scmp.le.s32.totalorder 2, %s8
    // Predicated region
    $region40: #{forward.1} parent=5 // pred_check
      %p460 = pneg %p459
    $region41: #{forward.1} parent=5 // pred_check_branch
      %462 = sbr.rel (%p460) target = $region43
    $region42: #{forward.1} parent=5 // pred_region
      %s463 = ssub.s32 %s8, 2
      // Predicated region
      $region44: #{forward.1} parent=42 // pred_check
        %p464 = pneg %p84
      $region45: #{forward.1} parent=42 // pred_check_branch
        %466 = sbr.rel (%p464) target = $region47
      $region46: #{forward.1} parent=42 // pred_region
        %s467 = smul.u32 2, %s14
        %p468 = scmp.lt.s32.totalorder %s467, 3
        %s469 = scalar_select %p468, %s467, 3
        %s470 = smul.addr %s469, 8
        %s471 = smul.addr %s470, 8
        %s472 = scalar_lea.vmem %s2, %s471
      $region47: #{forward.1} parent=42 // pred_fallthru
        _
    $region43: #{forward.1} parent=5 // pred_fallthru
      _
  $region6: #{forward.1} parent=0 // loop_footer
    %s12 = sadd.s32 1, %s8
  $region7: #{forward.1} parent=0 // loop_footer_branch
    %7 = sbr.rel target = $region3
  $region8: #{forward.1} parent=0 // loop_exit
    _

</llo_original>
